<compile_context>
chip_gen: v5e
topology: v5e:2x2
jax: 0.10.0
libtpu: 0.0.40
codegen_flags: <defaults>
</compile_context>

<pallas_src>
import functools
import math

import jax
import jax.numpy as jnp
from jax.experimental import pallas as pl
from jax.experimental.pallas import tpu as pltpu


_EPS = 1e-7
# Arrays bigger than ~1 MiB (f32-equivalent) are split into >= ~4 grid steps.
_MIN_SPLIT_ELEMS = 256 * 1024


def _cdiv(a, b):
    return -(-a // b)


# --------------------------------------------------------------------------
# Generation-aware VMEM budgets
# --------------------------------------------------------------------------
def _vmem_budget():
    """Returns (per-buffer tile budget bytes, default vmem limit, hard cap)."""
    try:
        cap = int(pltpu.get_tpu_info().vmem_capacity_bytes)
    except Exception:
        cap = 0
    if cap <= 0:
        # Unknown generation: conservative defaults, safe on every TPU.
        return 4 << 20, 32 << 20, 48 << 20
    if cap <= (64 << 20):
        # v7x-class: 64 MiB physical VMEM per TensorCore.
        return 6 << 20, 48 << 20, cap - (8 << 20)
    # v5e / v6e: 128 MiB physical VMEM.
    return 8 << 20, 64 << 20, cap - (32 << 20)


def _vmem_limit(block_f32_bytes, default_limit, hard_cap):
    # 2x double-buffered input + 2x output + ~1 f32 upcast temp, all accounted
    # at f32 width (covers sub-f32 inputs), plus slack.
    needed = 5 * block_f32_bytes + (1 << 20)
    return int(min(hard_cap, max(default_limit, needed)))


# --------------------------------------------------------------------------
# Power helpers (integer-power specialisation; general p matches torch.pow,
# including NaN for negative sums with fractional roots).
# --------------------------------------------------------------------------
def _pow_elem(x, power):
    if power == 1:
        return x
    if power == 2:
        return x * x
    if power == 3:
        return x * x * x
    if power == 4:
        x2 = x * x
        return x2 * x2
    return jnp.power(x, power)


def _root(s, power):
    if power == 1:
        return s
    if power == 2:
        return jnp.sqrt(s)
    if power == 4:
        return jnp.sqrt(jnp.sqrt(s))
    return jnp.power(s, 1.0 / power)


# --------------------------------------------------------------------------
# Kernels
# --------------------------------------------------------------------------
def _normalize_kernel(x_ref, o_ref, *, power, axis):
    # Rows path: block (tile_r, W), reduce axis=-1 (lanes).
    # Channels path: block (tile_n, C, tile_l), reduce axis=1 (sublanes).
    x = x_ref[...].astype(jnp.float32)
    norm = _root(jnp.sum(_pow_elem(x, power), axis=axis, keepdims=True), power)
    inv = pl.reciprocal(norm + _EPS, approx=False)
    o_ref[...] = (x * inv).astype(o_ref.dtype)


def _normalize_rows_packed_kernel(x_ref, o_ref, *, power, c):
    # x_ref: (tile_r, 128) where each row packs g = 128 // c original rows of
    # width c (c is a power of two).  Per-segment sums are computed with two
    # log2(c) roll-add trees (single-vreg lane rotates on the otherwise idle
    # XLU), keeping loads/stores fully lane-dense.
    gc = x_ref.shape[-1]
    x = x_ref[...].astype(jnp.float32)
    xp = _pow_elem(x, power)

    # Wrapping windowed sum of width c "ending" at each lane.
    s = xp
    shift = 1
    while shift < c:
        s = s + pltpu.roll(s, shift, 1)
        shift *= 2

    # Lanes with (lane % c == c - 1) now hold exactly their segment's sum.
    lane = jax.lax.broadcasted_iota(jnp.int32, (1, gc), 1)
    seg = jnp.where(lane % c == c - 1, s, 0.0)

    # Spread each segment-end value back over its whole segment.
    shift = 1
    while shift < c:
        seg = seg + pltpu.roll(seg, gc - shift, 1)
        shift *= 2

    inv = pl.reciprocal(_root(seg, power) + _EPS, approx=False)
    o_ref[...] = (x * inv).astype(o_ref.dtype)


# --------------------------------------------------------------------------
# Tile sizing
# --------------------------------------------------------------------------
def _row_tile(n_rows, n_cols, itemsize, max_elems):
    sub = max(8, 32 // itemsize)  # sublane packing: f32 -> 8, bf16 -> 16
    t = max(sub, (max(1, max_elems // max(1, n_cols)) // sub) * sub)
    if n_rows * n_cols >= _MIN_SPLIT_ELEMS:
        # Keep >= ~4 grid steps: DMA/compute overlap + both v7x TensorCores.
        cap = _cdiv(_cdiv(n_rows, 4), sub) * sub
        t = min(t, max(sub, cap))
    return n_rows if t >= n_rows else t


def _chan_tiles(n, c, l, max_elems):
    # Lane tile: multiple of 128 (or the full folded spatial extent).
    if l <= 128:
        tile_l = l
    else:
        t = (max(1, max_elems // max(1, c)) // 128) * 128
        tile_l = l if t >= l else max(128, t)
    # Batch-tile: pack many (C, tile_l) slabs per block so thousands of small
    # feature maps don't each pay the ~0.35us grid-step overhead.
    tile_n = min(n, max(1, max_elems // max(1, c * tile_l)))
    if n * c * l >= _MIN_SPLIT_ELEMS:
        l_blocks = _cdiv(l, tile_l)
        if l_blocks < 4:
            tile_n = min(tile_n, max(1, _cdiv(n, _cdiv(4, l_blocks))))
    return tile_n, tile_l


# --------------------------------------------------------------------------
# pallas_call wrappers
# --------------------------------------------------------------------------
def _normalize_rows(x, power):
    """(R, W): L_p-normalise each row (reduce over the last / lane axis)."""
    r, w = x.shape
    tile_budget, default_limit, hard_cap = _vmem_budget()
    max_elems = tile_budget // 4  # budget in f32-equivalent elements
    tile_r = _row_tile(r, w, x.dtype.itemsize, max_elems)
    vmem_limit = _vmem_limit(tile_r * w * 4, default_limit, hard_cap)
    # TODO(synk): for pathologically wide rows (W*4 >> tile budget) the row
    # axis cannot be split below 8; a W-split accumulator variant is needed.
    kernel = functools.partial(_normalize_kernel, power=power, axis=-1)
    return pl.pallas_call(
        kernel,
        out_shape=jax.ShapeDtypeStruct((r, w), x.dtype),
        grid_spec=pltpu.PrefetchScalarGridSpec(
            num_scalar_prefetch=0,
            grid=(pl.cdiv(r, tile_r),),
            in_specs=[pl.BlockSpec((tile_r, w), lambda i: (i, 0))],
            out_specs=pl.BlockSpec((tile_r, w), lambda i: (i, 0)),
        ),
        compiler_params=pltpu.CompilerParams(
            dimension_semantics=("parallel",),
            vmem_limit_bytes=vmem_limit,
        ),
    )(x)


def _normalize_rows_packed(x, power, g):
    """(N, C) with C < 128, 128 % C == 0, N % g == 0: lane-packed row path."""
    n, c = x.shape
    gc = g * c  # == 128
    xr = x.reshape(n // g, gc)  # free, contiguous
    r = n // g
    tile_budget, default_limit, hard_cap = _vmem_budget()
    # Halved budget: the roll-tree kernel keeps a couple of extra full-block
    # f32 temps live.
    max_elems = tile_budget // 8
    tile_r = _row_tile(r, gc, x.dtype.itemsize, max_elems)
    vmem_limit = _vmem_limit(tile_r * gc * 4, default_limit, hard_cap)
    kernel = functools.partial(_normalize_rows_packed_kernel, power=power, c=c)
    out = pl.pallas_call(
        kernel,
        out_shape=jax.ShapeDtypeStruct((r, gc), x.dtype),
        grid_spec=pltpu.PrefetchScalarGridSpec(
            num_scalar_prefetch=0,
            grid=(pl.cdiv(r, tile_r),),
            in_specs=[pl.BlockSpec((tile_r, gc), lambda i: (i, 0))],
            out_specs=pl.BlockSpec((tile_r, gc), lambda i: (i, 0)),
        ),
        compiler_params=pltpu.CompilerParams(
            dimension_semantics=("parallel",),
            vmem_limit_bytes=vmem_limit,
        ),
    )(xr)
    return out.reshape(n, c)


def _normalize_channels(x, power):
    """(N, C, L): L_p-normalise over the channel axis (axis 1 / sublanes)."""
    n, c, l = x.shape
    tile_budget, default_limit, hard_cap = _vmem_budget()
    max_elems = tile_budget // 4
    tile_n, tile_l = _chan_tiles(n, c, l, max_elems)
    vmem_limit = _vmem_limit(tile_n * c * tile_l * 4, default_limit, hard_cap)
    # TODO(synk): very wide C (where a (1, C, 128) block exceeds the budget)
    # only gets a bumped vmem_limit here; a C-split accumulator variant would
    # be the full fix.  Likewise C smaller than the sublane pack could fold C
    # into lanes to avoid sublane padding waste.
    kernel = functools.partial(_normalize_kernel, power=power, axis=1)
    return pl.pallas_call(
        kernel,
        out_shape=jax.ShapeDtypeStruct((n, c, l), x.dtype),
        grid_spec=pltpu.PrefetchScalarGridSpec(
            num_scalar_prefetch=0,
            grid=(pl.cdiv(n, tile_n), pl.cdiv(l, tile_l)),
            in_specs=[pl.BlockSpec((tile_n, c, tile_l), lambda i, j: (i, 0, j))],
            out_specs=pl.BlockSpec((tile_n, c, tile_l), lambda i, j: (i, 0, j)),
        ),
        compiler_params=pltpu.CompilerParams(
            dimension_semantics=("parallel", "parallel"),
            vmem_limit_bytes=vmem_limit,
        ),
    )(x)


def normalize(x, power: float = 2.0):
    """JAX/Pallas equivalent of PyTorch Normalize.forward (reduce over dim 1)."""
    power = float(power)
    if x.ndim < 2:
        raise ValueError("Normalize expects rank >= 2 input (reduces over dim 1)")
    if x.ndim == 2:
        n, c = x.shape
        if 0 < c < 128 and 128 % c == 0 and n > 0 and n % (128 // c) == 0:
            return _normalize_rows_packed(x, power, 128 // c)
        # TODO(synk): C < 128 that does not divide 128 (or N not divisible by
        # the pack factor) falls back to the lane-sparse row path.
        return _normalize_rows(x, power)
    # (N, C, *spatial): keep C second-minor, fold spatial dims into one lane
    # axis (free reshape of trailing contiguous dims).
    n, c = x.shape[0], x.shape[1]
    spatial = x.shape[2:]
    l = math.prod(spatial)
    out = _normalize_channels(x.reshape(n, c, l), power)
    return out.reshape(n, c, *spatial)


if __name__ == "__main__":
    key = jax.random.PRNGKey(0)
    k1, k2, k3 = jax.random.split(key, 3)

    def reference(x, p):
        s = jnp.sum(jnp.power(x, p), axis=1, keepdims=True)
        return x / (jnp.power(s, 1.0 / p) + 1e-7)

    # (num_patches, channels) with C < 128: exercises the lane-packed row path
    # (output last dim becomes a dense 128 lanes).
    feats = jax.random.normal(k1, (16, 32), dtype=jnp.float32)
    out = jax.block_until_ready(normalize(feats, power=2.0))
    assert jnp.allclose(out, reference(feats, 2.0), atol=1e-5, rtol=1e-5)

    # Non-default integer power on the same packed path.
    out_p4 = jax.block_until_ready(normalize(feats, power=4.0))
    assert jnp.allclose(out_p4, reference(feats, 4.0), atol=1e-5, rtol=1e-5)

    # Typical PatchSampleF width (C=256): plain lane-dense row kernel.
    feats_wide = jax.random.normal(k3, (64, 256), dtype=jnp.float32)
    out_wide = jax.block_until_ready(normalize(feats_wide, power=2.0))
    assert jnp.allclose(out_wide, reference(feats_wide, 2.0), atol=1e-5, rtol=1e-5)

    # NCHW conv feature map: channel axis reduced in place (no transposes),
    # spatial dims folded into the lane axis, batch-tiled grid.
    x_nchw = jax.random.normal(k2, (2, 4, 16, 16), dtype=jnp.float32)
    out_nchw = jax.block_until_ready(normalize(x_nchw, power=2.0))
    assert jnp.allclose(out_nchw, reference(x_nchw, 2.0), atol=1e-5, rtol=1e-5)

    print("KERNEL_OK")
</pallas_src>

<mosaic_0001>
module attributes {stable_mosaic.version = 11 : i64} {
  func.func @_normalize_rows_packed_kernel(%arg0: i32, %arg1: memref<4x128xf32, #tpu.memory_space<vmem>>, %arg2: memref<4x128xf32, #tpu.memory_space<vmem>>) attributes {dimension_semantics = [#tpu.dimension_semantics<parallel>], iteration_bounds = array<i64: 1>, scalar_prefetch = 0 : i64, scratch_operands = 0 : i64, tpu.core_type = #tpu.core_type<tc>, window_params = [{transform_indices = @transform_0, window_bounds = array<i64: 4, 128>}, {transform_indices = @transform_1, window_bounds = array<i64: 4, 128>}]} {
    %c0 = arith.constant 0 : index
    %c0_0 = arith.constant 0 : index
    %0 = vector.load %arg1[%c0, %c0_0] : memref<4x128xf32, #tpu.memory_space<vmem>>, vector<4x128xf32>
    %1 = arith.mulf %0, %0 : vector<4x128xf32>
    %c1_i32 = arith.constant 1 : i32
    %2 = tpu.dynamic_rotate %1 by %c1_i32 dim 1 : vector<4x128xf32>, i32 -> vector<4x128xf32>
    %3 = arith.addf %1, %2 : vector<4x128xf32>
    %c2_i32 = arith.constant 2 : i32
    %4 = tpu.dynamic_rotate %3 by %c2_i32 dim 1 : vector<4x128xf32>, i32 -> vector<4x128xf32>
    %5 = arith.addf %3, %4 : vector<4x128xf32>
    %c4_i32 = arith.constant 4 : i32
    %6 = tpu.dynamic_rotate %5 by %c4_i32 dim 1 : vector<4x128xf32>, i32 -> vector<4x128xf32>
    %7 = arith.addf %5, %6 : vector<4x128xf32>
    %c8_i32 = arith.constant 8 : i32
    %8 = tpu.dynamic_rotate %7 by %c8_i32 dim 1 : vector<4x128xf32>, i32 -> vector<4x128xf32>
    %9 = arith.addf %7, %8 : vector<4x128xf32>
    %c16_i32 = arith.constant 16 : i32
    %10 = tpu.dynamic_rotate %9 by %c16_i32 dim 1 : vector<4x128xf32>, i32 -> vector<4x128xf32>
    %11 = arith.addf %9, %10 : vector<4x128xf32>
    %12 = tpu.iota {dimensions = array<i32: 1>} : vector<1x128xi32>
    %c32_i32 = arith.constant 32 : i32
    %c0_i32 = arith.constant 0 : i32
    %13 = arith.cmpi eq, %c32_i32, %c0_i32 : i32
    %c1_i32_1 = arith.constant 1 : i32
    %14 = arith.select %13, %c1_i32_1, %c32_i32 : i32
    %15 = vector.broadcast %14 : i32 to vector<1x128xi32>
    %16 = arith.remsi %12, %15 : vector<1x128xi32>
    %c0_i32_2 = arith.constant 0 : i32
    %17 = vector.broadcast %c0_i32_2 : i32 to vector<1x128xi32>
    %18 = arith.cmpi ne, %16, %17 : vector<1x128xi32>
    %c0_i32_3 = arith.constant 0 : i32
    %19 = vector.broadcast %c0_i32_3 : i32 to vector<1x128xi32>
    %20 = arith.cmpi slt, %16, %19 : vector<1x128xi32>
    %c0_i32_4 = arith.constant 0 : i32
    %21 = arith.cmpi slt, %14, %c0_i32_4 : i32
    %22 = vector.broadcast %21 : i1 to vector<1x128xi1>
    %23 = vector.broadcast %22 : vector<1x128xi1> to vector<1x128xi1>
    %24 = arith.xori %20, %23 : vector<1x128xi1>
    %25 = arith.andi %24, %18 : vector<1x128xi1>
    %26 = vector.broadcast %14 : i32 to vector<1x128xi32>
    %27 = arith.addi %16, %26 : vector<1x128xi32>
    %28 = arith.select %25, %27, %16 : vector<1x128xi1>, vector<1x128xi32>
    %c31_i32 = arith.constant 31 : i32
    %29 = vector.broadcast %c31_i32 : i32 to vector<1x128xi32>
    %30 = arith.cmpi eq, %28, %29 : vector<1x128xi32>
    %cst = arith.constant 0.000000e+00 : f32
    %31 = vector.shape_cast %30 : vector<1x128xi1> to vector<1x128xi1>
    %32 = vector.broadcast %31 : vector<1x128xi1> to vector<4x128xi1>
    %33 = vector.broadcast %cst : f32 to vector<4x128xf32>
    %34 = arith.select %32, %11, %33 : vector<4x128xi1>, vector<4x128xf32>
    %c127_i32 = arith.constant 127 : i32
    %35 = tpu.dynamic_rotate %34 by %c127_i32 dim 1 : vector<4x128xf32>, i32 -> vector<4x128xf32>
    %36 = arith.addf %34, %35 : vector<4x128xf32>
    %c126_i32 = arith.constant 126 : i32
    %37 = tpu.dynamic_rotate %36 by %c126_i32 dim 1 : vector<4x128xf32>, i32 -> vector<4x128xf32>
    %38 = arith.addf %36, %37 : vector<4x128xf32>
    %c124_i32 = arith.constant 124 : i32
    %39 = tpu.dynamic_rotate %38 by %c124_i32 dim 1 : vector<4x128xf32>, i32 -> vector<4x128xf32>
    %40 = arith.addf %38, %39 : vector<4x128xf32>
    %c120_i32 = arith.constant 120 : i32
    %41 = tpu.dynamic_rotate %40 by %c120_i32 dim 1 : vector<4x128xf32>, i32 -> vector<4x128xf32>
    %42 = arith.addf %40, %41 : vector<4x128xf32>
    %c112_i32 = arith.constant 112 : i32
    %43 = tpu.dynamic_rotate %42 by %c112_i32 dim 1 : vector<4x128xf32>, i32 -> vector<4x128xf32>
    %44 = arith.addf %42, %43 : vector<4x128xf32>
    %45 = math.sqrt %44 : vector<4x128xf32>
    %cst_5 = arith.constant 1.000000e-07 : f32
    %46 = vector.broadcast %cst_5 : f32 to vector<4x128xf32>
    %47 = arith.addf %45, %46 : vector<4x128xf32>
    %48 = tpu.reciprocal %47 : vector<4x128xf32> -> vector<4x128xf32>
    %49 = arith.mulf %0, %48 : vector<4x128xf32>
    %c0_6 = arith.constant 0 : index
    %c0_7 = arith.constant 0 : index
    %50 = vector.load %arg2[%c0_6, %c0_7] : memref<4x128xf32, #tpu.memory_space<vmem>>, vector<4x128xf32>
    tpu.vector_store %arg2[%c0_6, %c0_7], %49 {strides = array<i32>} : memref<4x128xf32, #tpu.memory_space<vmem>>, vector<4x128xf32>,
    return
  }
  func.func @transform_0(%arg0: i32) -> (i32, i32) {
    %c0_i32 = arith.constant 0 : i32
    %c0_i32_0 = arith.constant 0 : i32
    return %arg0, %c0_i32 : i32, i32
  }
  func.func @transform_1(%arg0: i32) -> (i32, i32) {
    %c0_i32 = arith.constant 0 : i32
    %c0_i32_0 = arith.constant 0 : i32
    return %arg0, %c0_i32 : i32, i32
  }
}

</mosaic_0001>

<llo_original>
// kernel: tpu_custom_call.1
$region0: #{tpu_custom_call.1}
  #allocation0 [shape = 'u32[]', space=smem, size = 0x4, offset = 0x4, fixed_abs, tag = 'smem constant byte address 0x4 - core index']
  #allocation1 [shape = 'u32[72,128]{1,0:T(1,128)}', space=vmem, size = 0x9000, scoped, tag = 'internal scratch']
  %s0 = inlined_call_operand.hbm [shape: f32[4,128], index: 0, kind: input, shape index: {}]
  %s1 = inlined_call_operand.hbm [shape: f32[4,128], index: 1, kind: output, shape index: {}]
  %s2 = sld [smem:[#allocation0]]
  $region18: #{tpu_custom_call.1} parent=0
    _
  %s4 = ssub.s32 1, %s2
  %s5 = scalar_select 0, %s4, %s2
  $region1: #{tpu_custom_call.1} parent=0
    #allocation2 [shape = 'u8[2048]{0}', space=vmem, size = 0x800, scoped, tag = 'input window, operand 0, single buffered']
    #allocation3 [shape = 's32[1]{0}', space=sflag, size = 0x4, scoped, tag = 'scoped memory for tpu_custom_call.1']
    #allocation4 [shape = 's32[1]{0}', space=sflag, size = 0x4, scoped, tag = 'scoped memory for tpu_custom_call.1']
    #allocation5 [shape = 'u8[2048]{0}', space=vmem, size = 0x800, scoped, tag = 'output window, operand 0, single buffered']
    %6 = vsyncpa [#allocation3], 0
    %7 = vsyncpa [#allocation4], 0
    // Predicated region
    $region2: #{tpu_custom_call.1} parent=1 // pred_check
      _
    $region3: #{tpu_custom_call.1} parent=1 // pred_check_branch
      %9 = sbr.rel (0) target = $region5
    $region4: #{tpu_custom_call.1} parent=1 // pred_region
      %11 = vsyncadd [#allocation3], 0
      %s13 = sshll.u32 %s0, 4
      %s14 = int_to_ptr.hbm [resolvable:$true] %s13
      %s15 = sshll.u32 [#allocation2], 4
      %s16 = int_to_ptr.vmem [resolvable:$true] %s15
      %18 = dma.hbm_to_vmem [thread:$0]  %s14, 64, %s16, [#allocation3]
    $region5: #{tpu_custom_call.1} parent=1 // pred_fallthru
      _
    // Predicated region
    $region6: #{tpu_custom_call.1} parent=1 // pred_check
      _
    $region7: #{tpu_custom_call.1} parent=1 // pred_check_branch
      %20 = sbr.rel (0) target = $region9
    $region8: #{tpu_custom_call.1} parent=1 // pred_region
      %22 = dma.done [#allocation3], 64
    $region9: #{tpu_custom_call.1} parent=1 // pred_fallthru
      _
    %v23 = vld [vmem:[#allocation2] sm:$0xf]
    %v24 = vmul.f32 %v23, %v23
    %25 = vrot.lane.b32.xlu0 %v24, 1
    %v26 = vpop.permute.xlu0 %25
    %v27 = vadd.f32 %v24, %v26
    %28 = vrot.lane.b32.xlu0 %v27, 2
    %v29 = vpop.permute.xlu0 %28
    %v30 = vadd.f32 %v27, %v29
    %31 = vrot.lane.b32.xlu0 %v30, 4
    %v32 = vpop.permute.xlu0 %31
    %v33 = vadd.f32 %v30, %v32
    %34 = vrot.lane.b32.xlu0 %v33, 8
    %v35 = vpop.permute.xlu0 %34
    %v36 = vadd.f32 %v33, %v35
    %37 = vrot.lane.b32.xlu0 %v36, 16
    %v38 = vpop.permute.xlu0 %37
    %v39 = vadd.f32 %v36, %v38
    %v40 = vlaneseq
    %v41 = vand.u32 %v40, 127
    %vm42 = vcmp.lt.s32.totalorder %v41, 0
    %v43 = vsub.s32 0, %v41
    %v44 = vsel %vm42, %v43, %v41
    %v45 = vshrl.u32 %v44, 5
    %v46 = vand.u32 %v44, 31
    %v47 = vsub.s32 0, %v46
    %v48 = vsel %vm42, %v47, %v46
    %vm49 = vcmp.ne.s32.totalorder %v48, 0
    %vm50 = vcmp.lt.s32.totalorder %v48, 0
    %vm51 = vmand %vm50, %vm49
    %v52 = vadd.s32 %v48, 32
    %v53 = vsel %vm51, %v52, %v48
    %vm54 = vcmp.eq.s32.totalorder %v53, 31
    %v55 = vsel %vm54, 1, 0
    %vm56 = vcmp.eq.s32.totalorder %v55, 1
    %v57 = vsel %vm56, %v39, 0.0
    %58 = vrot.lane.b32.xlu0 %v57, 127
    %v59 = vpop.permute.xlu0 %58
    %v60 = vadd.f32 %v57, %v59
    %61 = vrot.lane.b32.xlu0 %v60, 126
    %v62 = vpop.permute.xlu0 %61
    %v63 = vadd.f32 %v60, %v62
    %64 = vrot.lane.b32.xlu0 %v63, 124
    %v65 = vpop.permute.xlu0 %64
    %v66 = vadd.f32 %v63, %v65
    %67 = vrot.lane.b32.xlu0 %v66, 120
    %v68 = vpop.permute.xlu0 %67
    %v69 = vadd.f32 %v66, %v68
    %70 = vrot.lane.b32.xlu0 %v69, 112
    %v71 = vpop.permute.xlu0 %70
    %v72 = vadd.f32 %v69, %v71
    %v73 = vrsqrt.pop %v72
    %v74 = vmul.f32 %v73, %v72
    %v75 = vmul.f32 %v74, %v73
    %v76 = vmul.f32 0.5, %v75
    %v77 = vsub.f32 1.5, %v76
    %v78 = vmul.f32 %v73, %v77
    %v79 = vmul.f32 %v72, %v78
    %vm80 = vcmp.eq.f32.partialorder %v72, inf
    %v81 = vsel %vm80, %v72, %v79
    %vm82 = vcmp.eq.f32.partialorder %v72, 0.0
    %v83 = vand.u32 %v72, 2147483648
    %v84 = vsel %vm82, %v83, %v81
    %v85 = vadd.f32 %v84, 1e-07
    %v86 = vrcp.pop %v85
    %v87 = vmul.f32 %v85, %v86
    %v88 = vsub.f32 1.0, %v87
    %v89 = vmul.f32 %v86, %v88
    %v90 = vadd.f32 %v86, %v89
    %vm91 = vweird.f32 %v85
    %vm92 = vweird.f32 %v86
    %vm93 = vmor %vm91, %vm92
    %v94 = vsel %vm93, %v86, %v90
    %v95 = vand.u32 2147483647, %v85
    %vm96 = vcmp.eq.f32.partialorder %v95, 8.507059e+37
    %v97 = vand.u32 %v85, 2147483648
    %v98 = vor.u32 1.1754944e-38, %v97
    %v99 = vsel %vm96, %v98, %v94
    %v100 = vmul.f32 %v23, %v99
    %101 = vst [vmem:[#allocation5] sm:$0xf] %v100
    // Predicated region
    $region10: #{tpu_custom_call.1} parent=1 // pred_check
      _
    $region11: #{tpu_custom_call.1} parent=1 // pred_check_branch
      %103 = sbr.rel (0) target = $region13
    $region12: #{tpu_custom_call.1} parent=1 // pred_region
      %105 = vsyncadd [#allocation4], 0
      %s107 = sshll.u32 [#allocation5], 4
      %s108 = int_to_ptr.vmem [resolvable:$true] %s107
      %s109 = sshll.u32 %s1, 4
      %s110 = int_to_ptr.hbm [resolvable:$true] %s109
      %112 = dma.vmem_to_hbm [thread:$0]  %s108, 64, %s110, [#allocation4]
    $region13: #{tpu_custom_call.1} parent=1 // pred_fallthru
      _
    // Predicated region
    $region14: #{tpu_custom_call.1} parent=1 // pred_check
      _
    $region15: #{tpu_custom_call.1} parent=1 // pred_check_branch
      %114 = sbr.rel (0) target = $region17
    $region16: #{tpu_custom_call.1} parent=1 // pred_region
      %116 = dma.done [#allocation4], 64
    $region17: #{tpu_custom_call.1} parent=1 // pred_fallthru
      _
    %117 = vsyncpa [#allocation3], 1
    %118 = vsyncpa [#allocation4], 1

</llo_original>
